<compile_context>
chip_gen: v7x
topology: tpu7x:2x2x1
jax: 0.10.0
libtpu: 0.0.40
codegen_flags: <defaults>
</compile_context>

<pallas_src>
import functools

import jax
import jax.numpy as jnp
from jax.experimental import pallas as pl
from jax.experimental.pallas import tpu as pltpu


def _round_up(x: int, m: int) -> int:
    return (x + m - 1) // m * m


def _mlp_fused_kernel(*refs, num_layers: int):
    """Fused MLP over one row tile.

    refs layout: x_ref, w0, b0, w1, b1, ..., w_{L-1}, b_{L-1}, out_ref
      x_ref : (tm, K0p)   input row tile (features zero-padded to 128 lanes)
      w_l   : (Klp, Nlp)  full weight, (in, out), zero-padded
      b_l   : (1, Nlp)    full bias, zero-padded
      out   : (tm, NLp)   output row tile
    All intermediates stay in VMEM / vregs; accumulation in f32.
    """
    x_ref = refs[0]
    out_ref = refs[-1]
    h = x_ref[...]
    for l in range(num_layers):
        w = refs[1 + 2 * l][...]
        b = refs[2 + 2 * l][...]
        h = jnp.dot(h, w, preferred_element_type=jnp.float32)
        h = h + b                       # broadcast (1, N) over rows, f32
        if l != num_layers - 1:
            h = jnp.maximum(h, 0.0)     # ReLU; dropout is identity in eval
    out_ref[...] = h.astype(out_ref.dtype)


def _vmem_budget_bytes(tm, k0p, padded_dims):
    """Rough VMEM footprint (double-buffered tiles + resident weights)."""
    nlast_p = padded_dims[-1][1]
    nmax_p = max(n for _, n in padded_dims)
    byts = 2 * tm * k0p * 4                      # x tile, double buffered
    byts += 2 * tm * nlast_p * 4                 # out tile, double buffered
    for kp, np_ in padded_dims:                  # weights + biases (2 bufs)
        byts += 2 * (kp * np_ + np_) * 4
    byts += 4 * tm * nmax_p * 4                  # live intermediate activations
    byts = int(byts * 1.5) + (4 << 20)           # headroom
    return max(32 << 20, min(byts, 64 << 20))    # safe on v7x's 64 MiB VMEM


def mlp_forward(feats, params, *, tm: int = 256):
    """feats: (M, K0) f32; params: list of (W (K,N) f32, b (N,) f32)."""
    M, K0 = feats.shape
    num_layers = len(params)

    # ---- pad feature dims to 128 lanes, rows to the row tile --------------
    k0p = _round_up(K0, 128)
    padded_params = []
    padded_dims = []
    for (w, b) in params:
        k, n = w.shape
        kp, np_ = _round_up(k, 128), _round_up(n, 128)
        wp = jnp.zeros((kp, np_), jnp.float32).at[:k, :n].set(w)
        bp = jnp.zeros((1, np_), jnp.float32).at[0, :n].set(b)
        padded_params.append((wp, bp))
        padded_dims.append((kp, np_))
    nlast = params[-1][0].shape[1]
    nlast_p = padded_dims[-1][1]

    if M < tm:
        tm = max(8, _round_up(M, 8))             # tiny inputs: one tile
    m_pad = _round_up(M, tm)
    x = jnp.zeros((m_pad, k0p), jnp.float32).at[:M, :K0].set(feats)

    # ---- block specs ------------------------------------------------------
    in_specs = [pl.BlockSpec((tm, k0p), lambda i: (i, 0))]  # row tile of x
    for (kp, np_) in padded_dims:
        in_specs.append(pl.BlockSpec((kp, np_), lambda i: (0, 0)))  # full W
        in_specs.append(pl.BlockSpec((1, np_), lambda i: (0, 0)))   # full b
    out_spec = pl.BlockSpec((tm, nlast_p), lambda i: (i, 0))

    # TODO(synk): for very large input_dim (K), add an "arbitrary" K grid axis
    #             with a VMEM accumulator instead of shipping full (K, N) W.

    kernel = functools.partial(_mlp_fused_kernel, num_layers=num_layers)
    out_padded = pl.pallas_call(
        kernel,
        out_shape=jax.ShapeDtypeStruct((m_pad, nlast_p), jnp.float32),
        grid_spec=pltpu.PrefetchScalarGridSpec(
            num_scalar_prefetch=0,
            grid=(m_pad // tm,),
            in_specs=in_specs,
            out_specs=out_spec,
        ),
        compiler_params=pltpu.CompilerParams(
            dimension_semantics=("parallel",),
            vmem_limit_bytes=_vmem_budget_bytes(tm, k0p, padded_dims),
        ),
    )(x, *[a for wb in padded_params for a in wb])

    return out_padded[:M, :nlast]


class MLPPallas:
    """JAX/Pallas port of the PyTorch MLP (norm_type='none', eval mode)."""

    def __init__(self, num_layers, input_dim, hidden_dim, output_dim,
                 dropout_ratio=0.0, norm_type="none", key=None):
        assert norm_type == "none", "only norm_type='none' implemented"
        # TODO(synk): BatchNorm1d / LayerNorm variants not implemented
        #             (norm_type defaults to 'none' in the reference module).
        self.num_layers = num_layers
        if key is None:
            key = jax.random.PRNGKey(0)

        dims = []
        if num_layers == 1:
            dims.append((input_dim, output_dim))
        else:
            dims.append((input_dim, hidden_dim))
            for _ in range(num_layers - 2):
                dims.append((hidden_dim, hidden_dim))
            dims.append((hidden_dim, output_dim))

        self.params = []
        for (fan_in, fan_out) in dims:
            key, kw, kb = jax.random.split(key, 3)
            bound = 1.0 / (fan_in ** 0.5)
            # Deterministic init mimicking nn.Linear's default uniform init.
            # Stored as (in, out) so the kernel does x @ W.
            w = jax.random.uniform(kw, (fan_in, fan_out), jnp.float32,
                                   minval=-bound, maxval=bound)
            b = jax.random.uniform(kb, (fan_out,), jnp.float32,
                                   minval=-bound, maxval=bound)
            self.params.append((w, b))

    def __call__(self, feats, *, tm: int = 256):
        # TODO(synk): optional bf16 matmul operands (v6e/v7x MXU fast path);
        #             kept f32 here to preserve 1e-5 parity with the reference.
        return mlp_forward(feats, self.params, tm=tm)


if __name__ == "__main__":
    key = jax.random.PRNGKey(0)
    kx, kp = jax.random.split(key)

    # Small shapes consistent with node-classification features; row count
    # deliberately NOT a multiple of 8/32 to exercise the padding path.
    num_nodes, input_dim, hidden_dim, output_dim = 77, 32, 32, 16
    num_layers = 3

    feats = jax.random.normal(kx, (num_nodes, input_dim), jnp.float32)

    model = MLPPallas(num_layers, input_dim, hidden_dim, output_dim,
                      dropout_ratio=0.0, norm_type="none", key=kp)

    out = model(feats)
    out = jax.block_until_ready(out)

    # Pure-JAX reference check of the same forward pass.
    h = feats
    for l, (w, b) in enumerate(model.params):
        h = h @ w + b
        if l != num_layers - 1:
            h = jnp.maximum(h, 0.0)
    ref = jax.block_until_ready(h)

    assert out.shape == (num_nodes, output_dim)
    assert jnp.allclose(out, ref, atol=1e-5, rtol=1e-5)
    print("KERNEL_OK")
</pallas_src>

<mosaic_0001>
module attributes {stable_mosaic.version = 11 : i64} {
  func.func @_mlp_fused_kernel(%arg0: i32, %arg1: memref<80x128xf32, #tpu.memory_space<vmem>>, %arg2: memref<128x128xf32, #tpu.memory_space<vmem>>, %arg3: memref<1x128xf32, #tpu.memory_space<vmem>>, %arg4: memref<128x128xf32, #tpu.memory_space<vmem>>, %arg5: memref<1x128xf32, #tpu.memory_space<vmem>>, %arg6: memref<128x128xf32, #tpu.memory_space<vmem>>, %arg7: memref<1x128xf32, #tpu.memory_space<vmem>>, %arg8: memref<80x128xf32, #tpu.memory_space<vmem>>) attributes {dimension_semantics = [#tpu.dimension_semantics<parallel>], iteration_bounds = array<i64: 1>, scalar_prefetch = 0 : i64, scratch_operands = 0 : i64, tpu.core_type = #tpu.core_type<tc>, window_params = [{transform_indices = @transform_0, window_bounds = array<i64: 80, 128>}, {pipeline_mode = #tpu.pipeline_mode<synchronous>, transform_indices = @transform_1, window_bounds = array<i64: 128, 128>}, {pipeline_mode = #tpu.pipeline_mode<synchronous>, transform_indices = @transform_2, window_bounds = array<i64: 1, 128>}, {pipeline_mode = #tpu.pipeline_mode<synchronous>, transform_indices = @transform_3, window_bounds = array<i64: 128, 128>}, {pipeline_mode = #tpu.pipeline_mode<synchronous>, transform_indices = @transform_4, window_bounds = array<i64: 1, 128>}, {pipeline_mode = #tpu.pipeline_mode<synchronous>, transform_indices = @transform_5, window_bounds = array<i64: 128, 128>}, {pipeline_mode = #tpu.pipeline_mode<synchronous>, transform_indices = @transform_6, window_bounds = array<i64: 1, 128>}, {transform_indices = @transform_7, window_bounds = array<i64: 80, 128>}]} {
    %c0 = arith.constant 0 : index
    %c0_0 = arith.constant 0 : index
    %0 = vector.load %arg1[%c0, %c0_0] : memref<80x128xf32, #tpu.memory_space<vmem>>, vector<80x128xf32>
    %c0_1 = arith.constant 0 : index
    %c0_2 = arith.constant 0 : index
    %1 = vector.load %arg2[%c0_1, %c0_2] : memref<128x128xf32, #tpu.memory_space<vmem>>, vector<128x128xf32>
    %c0_3 = arith.constant 0 : index
    %c0_4 = arith.constant 0 : index
    %2 = vector.load %arg3[%c0_3, %c0_4] : memref<1x128xf32, #tpu.memory_space<vmem>>, vector<1x128xf32>
    %cst = arith.constant dense<0.000000e+00> : vector<80x128xf32>
    %3 = tpu.matmul %0, %1, %cst {dimension_numbers = #tpu.dot_dimension_numbers<[1], [0], [0], [1], [0, 0, 1, 1], [], []>} : vector<80x128xf32>, vector<128x128xf32>, vector<80x128xf32> -> vector<80x128xf32>
    %4 = vector.broadcast %2 : vector<1x128xf32> to vector<80x128xf32>
    %5 = arith.addf %3, %4 : vector<80x128xf32>
    %cst_5 = arith.constant 0.000000e+00 : f32
    %6 = vector.broadcast %cst_5 : f32 to vector<80x128xf32>
    %7 = arith.maximumf %5, %6 : vector<80x128xf32>
    %c0_6 = arith.constant 0 : index
    %c0_7 = arith.constant 0 : index
    %8 = vector.load %arg4[%c0_6, %c0_7] : memref<128x128xf32, #tpu.memory_space<vmem>>, vector<128x128xf32>
    %c0_8 = arith.constant 0 : index
    %c0_9 = arith.constant 0 : index
    %9 = vector.load %arg5[%c0_8, %c0_9] : memref<1x128xf32, #tpu.memory_space<vmem>>, vector<1x128xf32>
    %cst_10 = arith.constant dense<0.000000e+00> : vector<80x128xf32>
    %10 = tpu.matmul %7, %8, %cst_10 {dimension_numbers = #tpu.dot_dimension_numbers<[1], [0], [0], [1], [0, 0, 1, 1], [], []>} : vector<80x128xf32>, vector<128x128xf32>, vector<80x128xf32> -> vector<80x128xf32>
    %11 = vector.broadcast %9 : vector<1x128xf32> to vector<80x128xf32>
    %12 = arith.addf %10, %11 : vector<80x128xf32>
    %cst_11 = arith.constant 0.000000e+00 : f32
    %13 = vector.broadcast %cst_11 : f32 to vector<80x128xf32>
    %14 = arith.maximumf %12, %13 : vector<80x128xf32>
    %c0_12 = arith.constant 0 : index
    %c0_13 = arith.constant 0 : index
    %15 = vector.load %arg6[%c0_12, %c0_13] : memref<128x128xf32, #tpu.memory_space<vmem>>, vector<128x128xf32>
    %c0_14 = arith.constant 0 : index
    %c0_15 = arith.constant 0 : index
    %16 = vector.load %arg7[%c0_14, %c0_15] : memref<1x128xf32, #tpu.memory_space<vmem>>, vector<1x128xf32>
    %cst_16 = arith.constant dense<0.000000e+00> : vector<80x128xf32>
    %17 = tpu.matmul %14, %15, %cst_16 {dimension_numbers = #tpu.dot_dimension_numbers<[1], [0], [0], [1], [0, 0, 1, 1], [], []>} : vector<80x128xf32>, vector<128x128xf32>, vector<80x128xf32> -> vector<80x128xf32>
    %18 = vector.broadcast %16 : vector<1x128xf32> to vector<80x128xf32>
    %19 = arith.addf %17, %18 : vector<80x128xf32>
    %c0_17 = arith.constant 0 : index
    %c0_18 = arith.constant 0 : index
    %20 = vector.load %arg8[%c0_17, %c0_18] : memref<80x128xf32, #tpu.memory_space<vmem>>, vector<80x128xf32>
    tpu.vector_store %arg8[%c0_17, %c0_18], %19 {strides = array<i32>} : memref<80x128xf32, #tpu.memory_space<vmem>>, vector<80x128xf32>,
    return
  }
  func.func @transform_0(%arg0: i32) -> (i32, i32) {
    %c0_i32 = arith.constant 0 : i32
    %c0_i32_0 = arith.constant 0 : i32
    return %arg0, %c0_i32 : i32, i32
  }
  func.func @transform_1(%arg0: i32) -> (i32, i32) {
    %c0_i32 = arith.constant 0 : i32
    %c0_i32_0 = arith.constant 0 : i32
    %c0_i32_1 = arith.constant 0 : i32
    return %c0_i32, %c0_i32_0 : i32, i32
  }
  func.func @transform_2(%arg0: i32) -> (i32, i32) {
    %c0_i32 = arith.constant 0 : i32
    %c0_i32_0 = arith.constant 0 : i32
    %c0_i32_1 = arith.constant 0 : i32
    return %c0_i32, %c0_i32_0 : i32, i32
  }
  func.func @transform_3(%arg0: i32) -> (i32, i32) {
    %c0_i32 = arith.constant 0 : i32
    %c0_i32_0 = arith.constant 0 : i32
    %c0_i32_1 = arith.constant 0 : i32
    return %c0_i32, %c0_i32_0 : i32, i32
  }
  func.func @transform_4(%arg0: i32) -> (i32, i32) {
    %c0_i32 = arith.constant 0 : i32
    %c0_i32_0 = arith.constant 0 : i32
    %c0_i32_1 = arith.constant 0 : i32
    return %c0_i32, %c0_i32_0 : i32, i32
  }
  func.func @transform_5(%arg0: i32) -> (i32, i32) {
    %c0_i32 = arith.constant 0 : i32
    %c0_i32_0 = arith.constant 0 : i32
    %c0_i32_1 = arith.constant 0 : i32
    return %c0_i32, %c0_i32_0 : i32, i32
  }
  func.func @transform_6(%arg0: i32) -> (i32, i32) {
    %c0_i32 = arith.constant 0 : i32
    %c0_i32_0 = arith.constant 0 : i32
    %c0_i32_1 = arith.constant 0 : i32
    return %c0_i32, %c0_i32_0 : i32, i32
  }
  func.func @transform_7(%arg0: i32) -> (i32, i32) {
    %c0_i32 = arith.constant 0 : i32
    %c0_i32_0 = arith.constant 0 : i32
    return %arg0, %c0_i32 : i32, i32
  }
}

</mosaic_0001>

<llo_original>
// kernel: tpu_custom_call.1
$region0: #{tpu_custom_call.1}
  #allocation0 [shape = 'u32[]', space=smem, size = 0x4, offset = 0x4, fixed_abs, tag = 'smem constant byte address 0x4 - core index']
  #allocation1 [shape = 'u32[144,128]{1,0:T(1,128)}', space=vmem, size = 0x12000, scoped, tag = 'internal scratch']
  %s0 = inlined_call_operand.hbm [shape: f32[80,128], index: 0, kind: input, shape index: {}]
  %s1 = inlined_call_operand.hbm [shape: f32[128,128], index: 1, kind: input, shape index: {}]
  %s2 = inlined_call_operand.vmem [shape: f32[1,128], index: 2, kind: input, shape index: {}]
  %s3 = inlined_call_operand.hbm [shape: f32[128,128], index: 3, kind: input, shape index: {}]
  %s4 = inlined_call_operand.vmem [shape: f32[1,128], index: 4, kind: input, shape index: {}]
  %s5 = inlined_call_operand.hbm [shape: f32[128,128], index: 5, kind: input, shape index: {}]
  %s6 = inlined_call_operand.vmem [shape: f32[1,128], index: 6, kind: input, shape index: {}]
  %s7 = inlined_call_operand.hbm [shape: f32[80,128], index: 7, kind: output, shape index: {}]
  %s8 = sld [smem:[#allocation0]]
  $region54: #{tpu_custom_call.1} parent=0
    _
  %s10 = ssub.s32 1, %s8
  %s11 = scalar_select 0, %s10, %s8
  $region1: #{tpu_custom_call.1} parent=0
    #allocation2 [shape = 'u8[40960]{0}', space=vmem, size = 0xa000, scoped, tag = 'input window, operand 0, single buffered']
    #allocation3 [shape = 's32[1]{0}', space=sflag, size = 0x4, scoped, tag = 'scoped memory for tpu_custom_call.1']
    #allocation4 [shape = 's32[1]{0}', space=sflag, size = 0x4, scoped, tag = 'scoped memory for tpu_custom_call.1']
    #allocation5 [shape = 'u8[65536]{0}', space=vmem, size = 0x10000, scoped, tag = 'input window, operand 1, single buffered']
    #allocation6 [shape = 's32[1]{0}', space=sflag, size = 0x4, scoped, tag = 'scoped memory for tpu_custom_call.1']
    #allocation7 [shape = 'u8[65536]{0}', space=vmem, size = 0x10000, scoped, tag = 'input window, operand 3, single buffered']
    #allocation8 [shape = 'u8[65536]{0}', space=vmem, size = 0x10000, scoped, tag = 'input window, operand 5, single buffered']
    #allocation9 [shape = 's32[1]{0}', space=sflag, size = 0x4, scoped, tag = 'scoped memory for tpu_custom_call.1']
    #allocation10 [shape = 'u8[40960]{0}', space=vmem, size = 0xa000, scoped, tag = 'output window, operand 0, single buffered']
    %12 = vsyncpa [#allocation3], 0
    %13 = vsyncpa [#allocation6], 0
    %14 = vsyncpa [#allocation9], 0
    %15 = vsyncpa [#allocation4], 0
    // Predicated region
    $region2: #{tpu_custom_call.1} parent=1 // pred_check
      _
    $region3: #{tpu_custom_call.1} parent=1 // pred_check_branch
      %17 = sbr.rel (0) target = $region5
    $region4: #{tpu_custom_call.1} parent=1 // pred_region
      %s19 = ssub.s32 1280, 1280
      %20 = vsyncadd [#allocation3], %s19
      %s21 = sshll.u32 [#allocation2], 4
      %s22 = int_to_ptr.vmem [resolvable:$true] %s21
      %27 = dma.hbm_to_vmem [thread:$0]  %s0, 1280, %s22, [#allocation3], 128, 128, 8
    $region5: #{tpu_custom_call.1} parent=1 // pred_fallthru
      _
    // Predicated region
    $region6: #{tpu_custom_call.1} parent=1 // pred_check
      _
    $region7: #{tpu_custom_call.1} parent=1 // pred_check_branch
      %29 = sbr.rel (0) target = $region9
    $region8: #{tpu_custom_call.1} parent=1 // pred_region
      %s31 = ssub.s32 2048, 2048
      %32 = vsyncadd [#allocation6], %s31
      %s33 = sshll.u32 [#allocation5], 4
      %s34 = int_to_ptr.vmem [resolvable:$true] %s33
      %39 = dma.hbm_to_vmem [thread:$0]  %s1, 2048, %s34, [#allocation6], 128, 128, 8
    $region9: #{tpu_custom_call.1} parent=1 // pred_fallthru
      _
    // Predicated region
    $region10: #{tpu_custom_call.1} parent=1 // pred_check
      _
    $region11: #{tpu_custom_call.1} parent=1 // pred_check_branch
      %41 = sbr.rel (0) target = $region13
    $region12: #{tpu_custom_call.1} parent=1 // pred_region
      _
    $region13: #{tpu_custom_call.1} parent=1 // pred_fallthru
      _
    // Predicated region
    $region14: #{tpu_custom_call.1} parent=1 // pred_check
      _
    $region15: #{tpu_custom_call.1} parent=1 // pred_check_branch
      %43 = sbr.rel (0) target = $region17
    $region16: #{tpu_custom_call.1} parent=1 // pred_region
      %s45 = ssub.s32 2048, 2048
      %46 = vsyncadd [#allocation6], %s45
      %s47 = sshll.u32 [#allocation7], 4
      %s48 = int_to_ptr.vmem [resolvable:$true] %s47
      %53 = dma.hbm_to_vmem [thread:$0]  %s3, 2048, %s48, [#allocation6], 128, 128, 8
    $region17: #{tpu_custom_call.1} parent=1 // pred_fallthru
      _
    // Predicated region
    $region18: #{tpu_custom_call.1} parent=1 // pred_check
      _
    $region19: #{tpu_custom_call.1} parent=1 // pred_check_branch
      %55 = sbr.rel (0) target = $region21
    $region20: #{tpu_custom_call.1} parent=1 // pred_region
      _
    $region21: #{tpu_custom_call.1} parent=1 // pred_fallthru
      _
    // Predicated region
    $region22: #{tpu_custom_call.1} parent=1 // pred_check
      _
    $region23: #{tpu_custom_call.1} parent=1 // pred_check_branch
      %57 = sbr.rel (0) target = $region25
    $region24: #{tpu_custom_call.1} parent=1 // pred_region
      %s59 = ssub.s32 2048, 2048
      %60 = vsyncadd [#allocation9], %s59
      %s61 = sshll.u32 [#allocation8], 4
      %s62 = int_to_ptr.vmem [resolvable:$true] %s61
      %67 = dma.hbm_to_vmem [thread:$0]  %s5, 2048, %s62, [#allocation9], 128, 128, 8
    $region25: #{tpu_custom_call.1} parent=1 // pred_fallthru
      _
    // Predicated region
    $region26: #{tpu_custom_call.1} parent=1 // pred_check
      _
    $region27: #{tpu_custom_call.1} parent=1 // pred_check_branch
      %69 = sbr.rel (0) target = $region29
    $region28: #{tpu_custom_call.1} parent=1 // pred_region
      _
    $region29: #{tpu_custom_call.1} parent=1 // pred_fallthru
      _
    // Predicated region
    $region30: #{tpu_custom_call.1} parent=1 // pred_check
      _
    $region31: #{tpu_custom_call.1} parent=1 // pred_check_branch
      %71 = sbr.rel (0) target = $region33
    $region32: #{tpu_custom_call.1} parent=1 // pred_region
      %72 = dma.done [#allocation3], 1280
    $region33: #{tpu_custom_call.1} parent=1 // pred_fallthru
      _
    // Predicated region
    $region34: #{tpu_custom_call.1} parent=1 // pred_check
      _
    $region35: #{tpu_custom_call.1} parent=1 // pred_check_branch
      %74 = sbr.rel (0) target = $region37
    $region36: #{tpu_custom_call.1} parent=1 // pred_region
      %75 = dma.done [#allocation6], 2048
    $region37: #{tpu_custom_call.1} parent=1 // pred_fallthru
      _
    // Predicated region
    $region38: #{tpu_custom_call.1} parent=1 // pred_check
      _
    $region39: #{tpu_custom_call.1} parent=1 // pred_check_branch
      %77 = sbr.rel (0) target = $region41
    $region40: #{tpu_custom_call.1} parent=1 // pred_region
      %78 = dma.done [#allocation6], 2048
    $region41: #{tpu_custom_call.1} parent=1 // pred_fallthru
      _
    // Predicated region
    $region42: #{tpu_custom_call.1} parent=1 // pred_check
      _
    $region43: #{tpu_custom_call.1} parent=1 // pred_check_branch
      %80 = sbr.rel (0) target = $region45
    $region44: #{tpu_custom_call.1} parent=1 // pred_region
      %81 = dma.done [#allocation9], 2048
    $region45: #{tpu_custom_call.1} parent=1 // pred_fallthru
      _
    %v82 = vld [vmem:[#allocation2] sm:$0xff]
    %v83 = vld [vmem:[#allocation2 + $0x8] sm:$0xff]
    %v84 = vld [vmem:[#allocation2 + $0x10] sm:$0xff]
    %v85 = vld [vmem:[#allocation2 + $0x18] sm:$0xff]
    %v86 = vld [vmem:[#allocation2 + $0x20] sm:$0xff]
    %v87 = vld [vmem:[#allocation2 + $0x28] sm:$0xff]
    %v88 = vld [vmem:[#allocation2 + $0x30] sm:$0xff]
    %v89 = vld [vmem:[#allocation2 + $0x38] sm:$0xff]
    %v90 = vld [vmem:[#allocation2 + $0x40] sm:$0xff]
    %v91 = vld [vmem:[#allocation2 + $0x48] sm:$0xff]
    %v92 = vld [vmem:[#allocation5] sm:$0xff]
    %v93 = vld [vmem:[#allocation5 + $0x8] sm:$0xff]
    %v94 = vld [vmem:[#allocation5 + $0x10] sm:$0xff]
    %v95 = vld [vmem:[#allocation5 + $0x18] sm:$0xff]
    %v96 = vld [vmem:[#allocation5 + $0x20] sm:$0xff]
    %v97 = vld [vmem:[#allocation5 + $0x28] sm:$0xff]
    %v98 = vld [vmem:[#allocation5 + $0x30] sm:$0xff]
    %v99 = vld [vmem:[#allocation5 + $0x38] sm:$0xff]
    %v100 = vld [vmem:[#allocation5 + $0x40] sm:$0xff]
    %v101 = vld [vmem:[#allocation5 + $0x48] sm:$0xff]
    %v102 = vld [vmem:[#allocation5 + $0x50] sm:$0xff]
    %v103 = vld [vmem:[#allocation5 + $0x58] sm:$0xff]
    %v104 = vld [vmem:[#allocation5 + $0x60] sm:$0xff]
    %v105 = vld [vmem:[#allocation5 + $0x68] sm:$0xff]
    %v106 = vld [vmem:[#allocation5 + $0x70] sm:$0xff]
    %v107 = vld [vmem:[#allocation5 + $0x78] sm:$0xff]
    %v108 = vld [vmem:[%s2] sm:$0x1]
    %v110 = vlaneseq
    %v111 = vshrl.u32 %v110, 7
    %v112 = vsub.s32 0, %v111
    %v113 = vrot.slane %v108, %v112
    %115 = vmatprep.subr.mxu0 0.0
    %116 = vmatpush1.msra.mxu0 %v92
    %117 = vmatprep.subr.mxu0 0.0
    %118 = vmatpush1.msra.mxu0 %v93
    %119 = vmatprep.subr.mxu0 0.0
    %120 = vmatpush1.msra.mxu0 %v94
    %121 = vmatprep.subr.mxu0 0.0
    %122 = vmatpush1.msra.mxu0 %v95
    %123 = vmatprep.subr.mxu0 0.0
    %124 = vmatpush1.msra.mxu0 %v96
    %125 = vmatprep.subr.mxu0 0.0
    %126 = vmatpush1.msra.mxu0 %v97
    %127 = vmatprep.subr.mxu0 0.0
    %128 = vmatpush1.msra.mxu0 %v98
    %129 = vmatprep.subr.mxu0 0.0
    %130 = vmatpush1.msra.mxu0 %v99
    %131 = vmatprep.subr.mxu0 0.0
    %132 = vmatpush1.msra.mxu0 %v100
    %133 = vmatprep.subr.mxu0 0.0
    %134 = vmatpush1.msra.mxu0 %v101
    %135 = vmatprep.subr.mxu0 0.0
    %136 = vmatpush1.msra.mxu0 %v102
    %137 = vmatprep.subr.mxu0 0.0
    %138 = vmatpush1.msra.mxu0 %v103
    %139 = vmatprep.subr.mxu0 0.0
    %140 = vmatpush1.msra.mxu0 %v104
    %141 = vmatprep.subr.mxu0 0.0
    %142 = vmatpush1.msra.mxu0 %v105
    %143 = vmatprep.subr.mxu0 0.0
    %144 = vmatpush1.msra.mxu0 %v106
    %145 = vmatprep.subr.mxu0 0.0
    %146 = vmatpush1.msra.mxu0 %v107
    %147 = vmatprep.subr.mxu0 0.0
    %148 = vmatpush1.msra.mxu0 0.0
    %149 = vmatprep.subr.mxu0 0.0
    %150 = vmatpush1.msra.mxu0 0.0
    %151 = vmatprep.subr.mxu0 0.0
    %152 = vmatpush1.msra.mxu0 0.0
    %153 = vmatprep.subr.mxu0 0.0
    %154 = vmatpush1.msra.mxu0 0.0
    %155 = vmatprep.subr.mxu0 0.0
    %156 = vmatpush1.msra.mxu0 0.0
    %157 = vmatprep.subr.mxu0 0.0
    %158 = vmatpush1.msra.mxu0 0.0
    %159 = vmatprep.subr.mxu0 0.0
    %160 = vmatpush1.msra.mxu0 0.0
    %161 = vmatprep.subr.mxu0 0.0
    %162 = vmatpush1.msra.mxu0 0.0
    %163 = vmatprep.subr.mxu0 0.0
    %164 = vmatpush1.msra.mxu0 0.0
    %165 = vmatprep.subr.mxu0 0.0
    %166 = vmatpush1.msra.mxu0 0.0
    %167 = vmatprep.subr.mxu0 0.0
    %168 = vmatpush1.msra.mxu0 0.0
    %169 = vmatprep.subr.mxu0 0.0
    %170 = vmatpush1.msra.mxu0 0.0
    %171 = vmatprep.subr.mxu0 0.0
    %172 = vmatpush1.msra.mxu0 0.0
    %173 = vmatprep.subr.mxu0 0.0
    %174 = vmatpush1.msra.mxu0 0.0
    %175 = vmatprep.subr.mxu0 0.0
    %176 = vmatpush1.msra.mxu0 0.0
    %177 = vmatprep.subr.mxu0 0.0
    %178 = vmatpush1.msra.mxu0 0.0
    %179 = vmatprep.mubr.f32.mxu0 0.0
    %180 = vmatmul.mubr.f32.gmra.mrb[0].mxu0 %v82
    %v181 = vpop.f32.mrb[0].mxu0
    %v182 = vadd.f32 %v113, %v181
    %v183 = vpop.f32.mrb[0].mxu0
    %184 = vmatprep.mubr.f32.mxu0 0.0
    %185 = vmatmul.mubr.f32.gmra.mrb[0].mxu0 %v83
    %v186 = vpop.f32.mrb[0].mxu0
    %v187 = vadd.f32 %v113, %v186
    %v188 = vpop.f32.mrb[0].mxu0
    %189 = vmatprep.mubr.f32.mxu0 0.0
    %190 = vmatmul.mubr.f32.gmra.mrb[0].mxu0 %v84
    %v191 = vpop.f32.mrb[0].mxu0
    %v192 = vadd.f32 %v113, %v191
    %v193 = vpop.f32.mrb[0].mxu0
    %194 = vmatprep.mubr.f32.mxu0 0.0
    %195 = vmatmul.mubr.f32.gmra.mrb[0].mxu0 %v85
    %v196 = vpop.f32.mrb[0].mxu0
    %v197 = vadd.f32 %v113, %v196
    %v198 = vpop.f32.mrb[0].mxu0
    %199 = vmatprep.mubr.f32.mxu0 0.0
    %200 = vmatmul.mubr.f32.gmra.mrb[0].mxu0 %v86
    %v201 = vpop.f32.mrb[0].mxu0
    %v202 = vadd.f32 %v113, %v201
    %v203 = vpop.f32.mrb[0].mxu0
    %204 = vmatprep.mubr.f32.mxu0 0.0
    %205 = vmatmul.mubr.f32.gmra.mrb[0].mxu0 %v87
    %v206 = vpop.f32.mrb[0].mxu0
    %v207 = vadd.f32 %v113, %v206
    %v208 = vpop.f32.mrb[0].mxu0
    %209 = vmatprep.mubr.f32.mxu0 0.0
    %210 = vmatmul.mubr.f32.gmra.mrb[0].mxu0 %v88
    %v211 = vpop.f32.mrb[0].mxu0
    %v212 = vadd.f32 %v113, %v211
    %v213 = vpop.f32.mrb[0].mxu0
    %214 = vmatprep.mubr.f32.mxu0 0.0
    %215 = vmatmul.mubr.f32.gmra.mrb[0].mxu0 %v89
    %v216 = vpop.f32.mrb[0].mxu0
    %v217 = vadd.f32 %v113, %v216
    %v218 = vpop.f32.mrb[0].mxu0
    %219 = vmatprep.mubr.f32.mxu0 0.0
    %220 = vmatmul.mubr.f32.gmra.mrb[0].mxu0 %v90
    %v221 = vpop.f32.mrb[0].mxu0
    %v222 = vadd.f32 %v113, %v221
    %v223 = vpop.f32.mrb[0].mxu0
    %224 = vmatprep.mubr.f32.mxu0 0.0
    %225 = vmatmul.mubr.f32.gmra.mrb[0].mxu0 %v91
    %v226 = vpop.f32.mrb[0].mxu0
    %v227 = vadd.f32 %v113, %v226
    %v228 = vpop.f32.mrb[0].mxu0
    %229 = vdwg.mxu0
    %v230 = vmax.f32 %v182, 0.0
    %v231 = vmax.f32 %v187, 0.0
    %v232 = vmax.f32 %v192, 0.0
    %v233 = vmax.f32 %v197, 0.0
    %v234 = vmax.f32 %v202, 0.0
    %v235 = vmax.f32 %v207, 0.0
    %v236 = vmax.f32 %v212, 0.0
    %v237 = vmax.f32 %v217, 0.0
    %v238 = vmax.f32 %v222, 0.0
    %v239 = vmax.f32 %v227, 0.0
    %v240 = vld [vmem:[#allocation7] sm:$0xff]
    %v241 = vld [vmem:[#allocation7 + $0x8] sm:$0xff]
    %v242 = vld [vmem:[#allocation7 + $0x10] sm:$0xff]
    %v243 = vld [vmem:[#allocation7 + $0x18] sm:$0xff]
    %v244 = vld [vmem:[#allocation7 + $0x20] sm:$0xff]
    %v245 = vld [vmem:[#allocation7 + $0x28] sm:$0xff]
    %v246 = vld [vmem:[#allocation7 + $0x30] sm:$0xff]
    %v247 = vld [vmem:[#allocation7 + $0x38] sm:$0xff]
    %v248 = vld [vmem:[#allocation7 + $0x40] sm:$0xff]
    %v249 = vld [vmem:[#allocation7 + $0x48] sm:$0xff]
    %v250 = vld [vmem:[#allocation7 + $0x50] sm:$0xff]
    %v251 = vld [vmem:[#allocation7 + $0x58] sm:$0xff]
    %v252 = vld [vmem:[#allocation7 + $0x60] sm:$0xff]
    %v253 = vld [vmem:[#allocation7 + $0x68] sm:$0xff]
    %v254 = vld [vmem:[#allocation7 + $0x70] sm:$0xff]
    %v255 = vld [vmem:[#allocation7 + $0x78] sm:$0xff]
    %v256 = vld [vmem:[%s4] sm:$0x1]
    %v258 = vlaneseq
    %v259 = vshrl.u32 %v258, 7
    %v260 = vsub.s32 0, %v259
    %v261 = vrot.slane %v256, %v260
    %263 = vmatprep.subr.mxu0 0.0
    %264 = vmatpush1.msra.mxu0 %v240
    %265 = vmatprep.subr.mxu0 0.0
    %266 = vmatpush1.msra.mxu0 %v241
    %267 = vmatprep.subr.mxu0 0.0
    %268 = vmatpush1.msra.mxu0 %v242
    %269 = vmatprep.subr.mxu0 0.0
    %270 = vmatpush1.msra.mxu0 %v243
    %271 = vmatprep.subr.mxu0 0.0
    %272 = vmatpush1.msra.mxu0 %v244
    %273 = vmatprep.subr.mxu0 0.0
    %274 = vmatpush1.msra.mxu0 %v245
    %275 = vmatprep.subr.mxu0 0.0
    %276 = vmatpush1.msra.mxu0 %v246
    %277 = vmatprep.subr.mxu0 0.0
    %278 = vmatpush1.msra.mxu0 %v247
    %279 = vmatprep.subr.mxu0 0.0
    %280 = vmatpush1.msra.mxu0 %v248
    %281 = vmatprep.subr.mxu0 0.0
    %282 = vmatpush1.msra.mxu0 %v249
    %283 = vmatprep.subr.mxu0 0.0
    %284 = vmatpush1.msra.mxu0 %v250
    %285 = vmatprep.subr.mxu0 0.0
    %286 = vmatpush1.msra.mxu0 %v251
    %287 = vmatprep.subr.mxu0 0.0
    %288 = vmatpush1.msra.mxu0 %v252
    %289 = vmatprep.subr.mxu0 0.0
    %290 = vmatpush1.msra.mxu0 %v253
    %291 = vmatprep.subr.mxu0 0.0
    %292 = vmatpush1.msra.mxu0 %v254
    %293 = vmatprep.subr.mxu0 0.0
    %294 = vmatpush1.msra.mxu0 %v255
    %295 = vmatprep.subr.mxu0 0.0
    %296 = vmatpush1.msra.mxu0 0.0
    %297 = vmatprep.subr.mxu0 0.0
    %298 = vmatpush1.msra.mxu0 0.0
    %299 = vmatprep.subr.mxu0 0.0
    %300 = vmatpush1.msra.mxu0 0.0
    %301 = vmatprep.subr.mxu0 0.0
    %302 = vmatpush1.msra.mxu0 0.0
    %303 = vmatprep.subr.mxu0 0.0
    %304 = vmatpush1.msra.mxu0 0.0
    %305 = vmatprep.subr.mxu0 0.0
    %306 = vmatpush1.msra.mxu0 0.0
    %307 = vmatprep.subr.mxu0 0.0
    %308 = vmatpush1.msra.mxu0 0.0
    %309 = vmatprep.subr.mxu0 0.0
    %310 = vmatpush1.msra.mxu0 0.0
    %311 = vmatprep.subr.mxu0 0.0
    %312 = vmatpush1.msra.mxu0 0.0
    %313 = vmatprep.subr.mxu0 0.0
    %314 = vmatpush1.msra.mxu0 0.0
    %315 = vmatprep.subr.mxu0 0.0
    %316 = vmatpush1.msra.mxu0 0.0
    %317 = vmatprep.subr.mxu0 0.0
    %318 = vmatpush1.msra.mxu0 0.0
    %319 = vmatprep.subr.mxu0 0.0
    %320 = vmatpush1.msra.mxu0 0.0
    %321 = vmatprep.subr.mxu0 0.0
    %322 = vmatpush1.msra.mxu0 0.0
    %323 = vmatprep.subr.mxu0 0.0
    %324 = vmatpush1.msra.mxu0 0.0
    %325 = vmatprep.subr.mxu0 0.0
    %326 = vmatpush1.msra.mxu0 0.0
    %327 = vmatprep.mubr.f32.mxu0 0.0
    %328 = vmatmul.mubr.f32.gmra.mrb[0].mxu0 %v230
    %v329 = vpop.f32.mrb[0].mxu0
    %v330 = vadd.f32 %v261, %v329
    %v331 = vpop.f32.mrb[0].mxu0
    %332 = vmatprep.mubr.f32.mxu0 0.0
    %333 = vmatmul.mubr.f32.gmra.mrb[0].mxu0 %v231
    %v334 = vpop.f32.mrb[0].mxu0
    %v335 = vadd.f32 %v261, %v334
    %v336 = vpop.f32.mrb[0].mxu0
    %337 = vmatprep.mubr.f32.mxu0 0.0
    %338 = vmatmul.mubr.f32.gmra.mrb[0].mxu0 %v232
    %v339 = vpop.f32.mrb[0].mxu0
    %v340 = vadd.f32 %v261, %v339
    %v341 = vpop.f32.mrb[0].mxu0
    %342 = vmatprep.mubr.f32.mxu0 0.0
    %343 = vmatmul.mubr.f32.gmra.mrb[0].mxu0 %v233
    %v344 = vpop.f32.mrb[0].mxu0
    %v345 = vadd.f32 %v261, %v344
    %v346 = vpop.f32.mrb[0].mxu0
    %347 = vmatprep.mubr.f32.mxu0 0.0
    %348 = vmatmul.mubr.f32.gmra.mrb[0].mxu0 %v234
    %v349 = vpop.f32.mrb[0].mxu0
    %v350 = vadd.f32 %v261, %v349
    %v351 = vpop.f32.mrb[0].mxu0
    %352 = vmatprep.mubr.f32.mxu0 0.0
    %353 = vmatmul.mubr.f32.gmra.mrb[0].mxu0 %v235
    %v354 = vpop.f32.mrb[0].mxu0
    %v355 = vadd.f32 %v261, %v354
    %v356 = vpop.f32.mrb[0].mxu0
    %357 = vmatprep.mubr.f32.mxu0 0.0
    %358 = vmatmul.mubr.f32.gmra.mrb[0].mxu0 %v236
    %v359 = vpop.f32.mrb[0].mxu0
    %v360 = vadd.f32 %v261, %v359
    %v361 = vpop.f32.mrb[0].mxu0
    %362 = vmatprep.mubr.f32.mxu0 0.0
    %363 = vmatmul.mubr.f32.gmra.mrb[0].mxu0 %v237
    %v364 = vpop.f32.mrb[0].mxu0
    %v365 = vadd.f32 %v261, %v364
    %v366 = vpop.f32.mrb[0].mxu0
    %367 = vmatprep.mubr.f32.mxu0 0.0
    %368 = vmatmul.mubr.f32.gmra.mrb[0].mxu0 %v238
    %v369 = vpop.f32.mrb[0].mxu0
    %v370 = vadd.f32 %v261, %v369
    %v371 = vpop.f32.mrb[0].mxu0
    %372 = vmatprep.mubr.f32.mxu0 0.0
    %373 = vmatmul.mubr.f32.gmra.mrb[0].mxu0 %v239
    %v374 = vpop.f32.mrb[0].mxu0
    %v375 = vadd.f32 %v261, %v374
    %v376 = vpop.f32.mrb[0].mxu0
    %377 = vdwg.mxu0
    %v378 = vmax.f32 %v330, 0.0
    %v379 = vmax.f32 %v335, 0.0
    %v380 = vmax.f32 %v340, 0.0
    %v381 = vmax.f32 %v345, 0.0
    %v382 = vmax.f32 %v350, 0.0
    %v383 = vmax.f32 %v355, 0.0
    %v384 = vmax.f32 %v360, 0.0
    %v385 = vmax.f32 %v365, 0.0
    %v386 = vmax.f32 %v370, 0.0
    %v387 = vmax.f32 %v375, 0.0
    %v388 = vld [vmem:[#allocation8] sm:$0xff]
    %v389 = vld [vmem:[#allocation8 + $0x8] sm:$0xff]
    %v390 = vld [vmem:[#allocation8 + $0x10] sm:$0xff]
    %v391 = vld [vmem:[#allocation8 + $0x18] sm:$0xff]
    %v392 = vld [vmem:[#allocation8 + $0x20] sm:$0xff]
    %v393 = vld [vmem:[#allocation8 + $0x28] sm:$0xff]
    %v394 = vld [vmem:[#allocation8 + $0x30] sm:$0xff]
    %v395 = vld [vmem:[#allocation8 + $0x38] sm:$0xff]
    %v396 = vld [vmem:[#allocation8 + $0x40] sm:$0xff]
    %v397 = vld [vmem:[#allocation8 + $0x48] sm:$0xff]
    %v398 = vld [vmem:[#allocation8 + $0x50] sm:$0xff]
    %v399 = vld [vmem:[#allocation8 + $0x58] sm:$0xff]
    %v400 = vld [vmem:[#allocation8 + $0x60] sm:$0xff]
    %v401 = vld [vmem:[#allocation8 + $0x68] sm:$0xff]
    %v402 = vld [vmem:[#allocation8 + $0x70] sm:$0xff]
    %v403 = vld [vmem:[#allocation8 + $0x78] sm:$0xff]
    %v404 = vld [vmem:[%s6] sm:$0x1]
    %v406 = vlaneseq
    %v407 = vshrl.u32 %v406, 7
    %v408 = vsub.s32 0, %v407
    %v409 = vrot.slane %v404, %v408
    %411 = vmatprep.subr.mxu0 0.0
    %412 = vmatpush1.msra.mxu0 %v388
    %413 = vmatprep.subr.mxu0 0.0
    %414 = vmatpush1.msra.mxu0 %v389
    %415 = vmatprep.subr.mxu0 0.0
    %416 = vmatpush1.msra.mxu0 %v390
    %417 = vmatprep.subr.mxu0 0.0
    %418 = vmatpush1.msra.mxu0 %v391
    %419 = vmatprep.subr.mxu0 0.0
    %420 = vmatpush1.msra.mxu0 %v392
    %421 = vmatprep.subr.mxu0 0.0
    %422 = vmatpush1.msra.mxu0 %v393
    %423 = vmatprep.subr.mxu0 0.0
    %424 = vmatpush1.msra.mxu0 %v394
    %425 = vmatprep.subr.mxu0 0.0
    %426 = vmatpush1.msra.mxu0 %v395
    %427 = vmatprep.subr.mxu0 0.0
    %428 = vmatpush1.msra.mxu0 %v396
    %429 = vmatprep.subr.mxu0 0.0
    %430 = vmatpush1.msra.mxu0 %v397
    %431 = vmatprep.subr.mxu0 0.0
    %432 = vmatpush1.msra.mxu0 %v398
    %433 = vmatprep.subr.mxu0 0.0
    %434 = vmatpush1.msra.mxu0 %v399
    %435 = vmatprep.subr.mxu0 0.0
    %436 = vmatpush1.msra.mxu0 %v400
    %437 = vmatprep.subr.mxu0 0.0
    %438 = vmatpush1.msra.mxu0 %v401
    %439 = vmatprep.subr.mxu0 0.0
    %440 = vmatpush1.msra.mxu0 %v402
    %441 = vmatprep.subr.mxu0 0.0
    %442 = vmatpush1.msra.mxu0 %v403
    %443 = vmatprep.subr.mxu0 0.0
    %444 = vmatpush1.msra.mxu0 0.0
    %445 = vmatprep.subr.mxu0 0.0
    %446 = vmatpush1.msra.mxu0 0.0
    %447 = vmatprep.subr.mxu0 0.0
    %448 = vmatpush1.msra.mxu0 0.0
    %449 = vmatprep.subr.mxu0 0.0
    %450 = vmatpush1.msra.mxu0 0.0
    %451 = vmatprep.subr.mxu0 0.0
    %452 = vmatpush1.msra.mxu0 0.0
    %453 = vmatprep.subr.mxu0 0.0
    %454 = vmatpush1.msra.mxu0 0.0
    %455 = vmatprep.subr.mxu0 0.0
    %456 = vmatpush1.msra.mxu0 0.0
    %457 = vmatprep.subr.mxu0 0.0
    %458 = vmatpush1.msra.mxu0 0.0
    %459 = vmatprep.subr.mxu0 0.0
    %460 = vmatpush1.msra.mxu0 0.0
    %461 = vmatprep.subr.mxu0 0.0
    %462 = vmatpush1.msra.mxu0 0.0
    %463 = vmatprep.subr.mxu0 0.0
    %464 = vmatpush1.msra.mxu0 0.0
    %465 = vmatprep.subr.mxu0 0.0
    %466 = vmatpush1.msra.mxu0 0.0
    %467 = vmatprep.subr.mxu0 0.0
    %468 = vmatpush1.msra.mxu0 0.0
    %469 = vmatprep.subr.mxu0 0.0
    %470 = vmatpush1.msra.mxu0 0.0
    %471 = vmatprep.subr.mxu0 0.0
    %472 = vmatpush1.msra.mxu0 0.0
    %473 = vmatprep.subr.mxu0 0.0
    %474 = vmatpush1.msra.mxu0 0.0
    %475 = vmatprep.mubr.f32.mxu0 0.0
    %476 = vmatmul.mubr.f32.gmra.mrb[0].mxu0 %v378
    %v477 = vpop.f32.mrb[0].mxu0
    %v478 = vadd.f32 %v409, %v477
    %v479 = vpop.f32.mrb[0].mxu0
    %480 = vmatprep.mubr.f32.mxu0 0.0
    %481 = vmatmul.mubr.f32.gmra.mrb[0].mxu0 %v379
    %v482 = vpop.f32.mrb[0].mxu0
    %v483 = vadd.f32 %v409, %v482
    %v484 = vpop.f32.mrb[0].mxu0
    %485 = vmatprep.mubr.f32.mxu0 0.0
    %486 = vmatmul.mubr.f32.gmra.mrb[0].mxu0 %v380
    %v487 = vpop.f32.mrb[0].mxu0
    %v488 = vadd.f32 %v409, %v487
    %v489 = vpop.f32.mrb[0].mxu0
    %490 = vmatprep.mubr.f32.mxu0 0.0
    %491 = vmatmul.mubr.f32.gmra.mrb[0].mxu0 %v381
    %v492 = vpop.f32.mrb[0].mxu0
    %v493 = vadd.f32 %v409, %v492
    %v494 = vpop.f32.mrb[0].mxu0
    %495 = vmatprep.mubr.f32.mxu0 0.0
    %496 = vmatmul.mubr.f32.gmra.mrb[0].mxu0 %v382
    %v497 = vpop.f32.mrb[0].mxu0
    %v498 = vadd.f32 %v409, %v497
    %v499 = vpop.f32.mrb[0].mxu0
    %500 = vmatprep.mubr.f32.mxu0 0.0
    %501 = vmatmul.mubr.f32.gmra.mrb[0].mxu0 %v383
    %v502 = vpop.f32.mrb[0].mxu0
    %v503 = vadd.f32 %v409, %v502
    %v504 = vpop.f32.mrb[0].mxu0
    %505 = vmatprep.mubr.f32.mxu0 0.0
    %506 = vmatmul.mubr.f32.gmra.mrb[0].mxu0 %v384
    %v507 = vpop.f32.mrb[0].mxu0
    %v508 = vadd.f32 %v409, %v507
    %v509 = vpop.f32.mrb[0].mxu0
    %510 = vmatprep.mubr.f32.mxu0 0.0
    %511 = vmatmul.mubr.f32.gmra.mrb[0].mxu0 %v385
    %v512 = vpop.f32.mrb[0].mxu0
    %v513 = vadd.f32 %v409, %v512
    %v514 = vpop.f32.mrb[0].mxu0
    %515 = vmatprep.mubr.f32.mxu0 0.0
    %516 = vmatmul.mubr.f32.gmra.mrb[0].mxu0 %v386
    %v517 = vpop.f32.mrb[0].mxu0
    %v518 = vadd.f32 %v409, %v517
    %v519 = vpop.f32.mrb[0].mxu0
    %520 = vmatprep.mubr.f32.mxu0 0.0
    %521 = vmatmul.mubr.f32.gmra.mrb[0].mxu0 %v387
    %v522 = vpop.f32.mrb[0].mxu0
    %v523 = vadd.f32 %v409, %v522
    %v524 = vpop.f32.mrb[0].mxu0
    %525 = vdwg.mxu0
    %526 = vst [vmem:[#allocation10] sm:$0xff] %v478
    %527 = vst [vmem:[#allocation10 + $0x8] sm:$0xff] %v483
    %528 = vst [vmem:[#allocation10 + $0x10] sm:$0xff] %v488
    %529 = vst [vmem:[#allocation10 + $0x18] sm:$0xff] %v493
    %530 = vst [vmem:[#allocation10 + $0x20] sm:$0xff] %v498
    %531 = vst [vmem:[#allocation10 + $0x28] sm:$0xff] %v503
    %532 = vst [vmem:[#allocation10 + $0x30] sm:$0xff] %v508
    %533 = vst [vmem:[#allocation10 + $0x38] sm:$0xff] %v513
    %534 = vst [vmem:[#allocation10 + $0x40] sm:$0xff] %v518
    %535 = vst [vmem:[#allocation10 + $0x48] sm:$0xff] %v523
    // Predicated region
    $region46: #{tpu_custom_call.1} parent=1 // pred_check
      _
    $region47: #{tpu_custom_call.1} parent=1 // pred_check_branch
      %537 = sbr.rel (0) target = $region49
    $region48: #{tpu_custom_call.1} parent=1 // pred_region
      %s539 = ssub.s32 1280, 1280
      %540 = vsyncadd [#allocation4], %s539
      %s541 = sshll.u32 [#allocation10], 4
      %s542 = int_to_ptr.vmem [resolvable:$true] %s541
      %547 = dma.vmem_to_hbm [thread:$0]  %s542, 1280, %s7, [#allocation4], 128, 128, 8
    $region49: #{tpu_custom_call.1} parent=1 // pred_fallthru
      _
    // Predicated region
    $region50: #{tpu_custom_call.1} parent=1 // pred_check
      _
    $region51: #{tpu_custom_call.1} parent=1 // pred_check_branch
      %549 = sbr.rel (0) target = $region53
    $region52: #{tpu_custom_call.1} parent=1 // pred_region
      %550 = dma.done [#allocation4], 1280
    $region53: #{tpu_custom_call.1} parent=1 // pred_fallthru
      _
    %551 = vsyncpa [#allocation3], 1
    %552 = vsyncpa [#allocation6], 1
    %553 = vsyncpa [#allocation9], 1
    %554 = vsyncpa [#allocation4], 1

</llo_original>
